<compile_context>
chip_gen: v6e
topology: v6e:2x2x1
jax: 0.10.0
libtpu: 0.0.40
codegen_flags: <defaults>
</compile_context>

<pallas_src>
import functools

import jax
import jax.numpy as jnp
from jax.experimental import pallas as pl
from jax.experimental.pallas import tpu as pltpu

_LANE = 128


def layernorm_kernel(x_ref, gamma_ref, beta_ref, o_ref, *, eps, d_true):
    # x_ref: (block_rows, D_pad) tile in VMEM; gamma/beta: (1, D_pad), resident.
    x = x_ref[...].astype(jnp.float32)
    g = gamma_ref[...].astype(jnp.float32)
    b = beta_ref[...].astype(jnp.float32)

    d_pad = x.shape[-1]
    inv_d = jnp.float32(1.0 / d_true)

    lane_mask = None
    if d_pad != d_true:
        # (1, D_pad) lane mask (broadcast inside jnp.where) -- no full-tile iota.
        lane = jax.lax.broadcasted_iota(jnp.int32, (1, d_pad), 1)
        lane_mask = lane < d_true
        # Mask the MEAN input too: do not rely on padded lanes being zero in HBM.
        x = jnp.where(lane_mask, x, 0.0)

    mean = jnp.sum(x, axis=-1, keepdims=True) * inv_d
    xc = x - mean
    if lane_mask is not None:
        # Padded lanes of xc hold -mean; mask them out of the variance.
        xc = jnp.where(lane_mask, xc, 0.0)
    # Reuse the centered tile for both the variance reduction and x_hat.
    var = jnp.sum(xc * xc, axis=-1, keepdims=True) * inv_d
    x_hat = xc * jax.lax.rsqrt(var + eps)
    o_ref[...] = (g * x_hat + b).astype(o_ref.dtype)


def _round_up(x, m):
    return ((x + m - 1) // m) * m


def _vmem_capacity_bytes():
    try:
        return int(pltpu.get_tpu_info().vmem_capacity_bytes)
    except Exception:
        return 128 * 1024 * 1024  # conservative default (v5e/v6e class)


def _per_row_bytes(d_pad, in_itemsize, out_itemsize):
    # Double-buffered input + output tiles, plus ~4 f32 full-tile temporaries
    # (x_f32, xc, xc*xc, affine chain) Mosaic may materialize.
    return d_pad * (2 * in_itemsize + 2 * out_itemsize + 4 * 4)


def _pick_block_rows(R, d_pad, in_itemsize, out_itemsize, small_vmem):
    # Sublane packing: 8 rows for f32, 16 for bf16, 32 for int8/fp8.
    sub = max(8, 32 // in_itemsize)
    # Generation-aware tile budget: v7x has only 64 MiB physical VMEM.
    budget = (20 << 20) if small_vmem else (32 << 20)
    rows = max(sub, budget // _per_row_bytes(d_pad, in_itemsize, out_itemsize))
    rows = min(rows, 1024)
    # Keep >= ~8 grid steps when R is large so both v7x TensorCores stay busy
    # and the DMA pipeline always has a next tile to prefetch.
    min_steps = 8
    if R >= min_steps * sub:
        rows = min(rows, _round_up(pl.cdiv(R, min_steps), sub))
    # Don't make the tile bigger than the (sublane-rounded) row count.
    rows = min(rows, _round_up(R, sub))
    rows = max(sub, (rows // sub) * sub)
    return rows


def layer_norm(x, gamma, beta, eps=1e-05, block_rows=None):
    """x: (..., D); gamma, beta: (D,). Returns same shape/dtype as x."""
    orig_shape = x.shape
    D = orig_shape[-1]
    x2 = x.reshape(-1, D)
    R = x2.shape[0]

    in_itemsize = jnp.dtype(x.dtype).itemsize
    out_itemsize = in_itemsize

    small_vmem = _vmem_capacity_bytes() <= (64 << 20)  # v7x-class

    # Lane-dense last dim: only pad when D is not already a multiple of 128.
    # Typical transformer widths (768/1024/4096/...) take the no-pad path.
    D_pad = D if D % _LANE == 0 else _round_up(D, _LANE)
    if D_pad != D:
        x2 = jnp.pad(x2, ((0, 0), (0, D_pad - D)))
        gamma2 = jnp.pad(gamma, (0, D_pad - D)).reshape(1, D_pad)
        beta2 = jnp.pad(beta, (0, D_pad - D)).reshape(1, D_pad)
    else:
        gamma2 = gamma.reshape(1, D_pad)
        beta2 = beta.reshape(1, D_pad)

    if block_rows is None:
        block_rows = _pick_block_rows(R, D_pad, in_itemsize, out_itemsize, small_vmem)
    else:
        sub = max(8, 32 // in_itemsize)
        block_rows = max(sub, _round_up(block_rows, sub))

    # No row padding: Pallas handles the partial last block. OOB rows read
    # garbage and produce garbage per-row stats, but their writes are dropped
    # and nothing here does a cross-row reduction.
    grid = (pl.cdiv(R, block_rows),)

    # Scoped-VMEM limit sized to the actual buffers plus compiler-scratch
    # headroom; capped generation-aware (<=40 MiB on v7x, <=64 MiB elsewhere).
    vmem_limit = int(
        block_rows * _per_row_bytes(D_pad, in_itemsize, out_itemsize)
        + 2 * D_pad * 4
        + (8 << 20)
    )
    cap = (40 << 20) if small_vmem else (64 << 20)
    vmem_limit = max(16 << 20, min(vmem_limit, cap))

    kernel = functools.partial(layernorm_kernel, eps=eps, d_true=D)

    out = pl.pallas_call(
        kernel,
        out_shape=jax.ShapeDtypeStruct((R, D_pad), x.dtype),
        grid_spec=pltpu.PrefetchScalarGridSpec(
            num_scalar_prefetch=0,
            grid=grid,
            in_specs=[
                # NOTE: on v7x, sweeping pipeline_mode=pl.Buffered(3) here (and on
                # the output) can help hide per-step overhead once grid >= 8.
                pl.BlockSpec((block_rows, D_pad), lambda i: (i, 0)),
                pl.BlockSpec((1, D_pad), lambda i: (0, 0)),
                pl.BlockSpec((1, D_pad), lambda i: (0, 0)),
            ],
            out_specs=pl.BlockSpec((block_rows, D_pad), lambda i: (i, 0)),
        ),
        compiler_params=pltpu.CompilerParams(
            dimension_semantics=("parallel",),
            vmem_limit_bytes=vmem_limit,
        ),
    )(x2, gamma2, beta2)

    if D_pad != D:
        out = out[:, :D]
    return out.reshape(orig_shape)


if __name__ == "__main__":
    def ref_ln(x, gamma, beta, eps=1e-05):
        mean = jnp.mean(x, axis=-1, keepdims=True)
        var = jnp.mean((x - mean) ** 2, axis=-1, keepdims=True)
        return gamma * ((x - mean) / jnp.sqrt(var + eps)) + beta

    # Case 1: small GPT-like (B, T, D) with default-initialized params.
    key = jax.random.PRNGKey(0)
    B, T, D = 2, 8, 32
    x = jax.random.normal(key, (B, T, D), dtype=jnp.float32)
    gamma = jnp.ones((D,), dtype=jnp.float32)   # nn.Parameter(torch.ones(dim))
    beta = jnp.zeros((D,), dtype=jnp.float32)   # nn.Parameter(torch.zeros(dim))

    y = jax.block_until_ready(layer_norm(x, gamma, beta, eps=1e-05))
    assert y.shape == x.shape and y.dtype == x.dtype
    assert jnp.allclose(y, ref_ln(x, gamma, beta), atol=2e-5, rtol=2e-5), \
        "mismatch vs reference (case 1)"

    # Case 2: ragged row count + nontrivial gamma/beta (exercises the partial
    # last row-block and the lane-padding/masking path).
    k1, k2, k3 = jax.random.split(jax.random.PRNGKey(1), 3)
    B2, T2, D2 = 3, 5, 48
    x2 = jax.random.normal(k1, (B2, T2, D2), dtype=jnp.float32)
    g2 = jax.random.normal(k2, (D2,), dtype=jnp.float32)
    b2 = jax.random.normal(k3, (D2,), dtype=jnp.float32)
    y2 = jax.block_until_ready(layer_norm(x2, g2, b2, eps=1e-05))
    assert jnp.allclose(y2, ref_ln(x2, g2, b2), atol=2e-5, rtol=2e-5), \
        "mismatch vs reference (case 2)"

    # Case 3: lane-aligned D (no-pad fast path), non-multiple-of-block rows.
    k4 = jax.random.PRNGKey(2)
    x3 = jax.random.normal(k4, (7, 11, 256), dtype=jnp.float32)
    g3 = jnp.ones((256,), dtype=jnp.float32)
    b3 = jnp.zeros((256,), dtype=jnp.float32)
    y3 = jax.block_until_ready(layer_norm(x3, g3, b3, eps=1e-05))
    assert jnp.allclose(y3, ref_ln(x3, g3, b3), atol=2e-5, rtol=2e-5), \
        "mismatch vs reference (case 3)"

    print("KERNEL_OK")
</pallas_src>

<mosaic_0001>
module attributes {stable_mosaic.version = 11 : i64} {
  func.func @layernorm_kernel(%arg0: i32, %arg1: memref<16x128xf32, #tpu.memory_space<vmem>>, %arg2: memref<1x128xf32, #tpu.memory_space<vmem>>, %arg3: memref<1x128xf32, #tpu.memory_space<vmem>>, %arg4: memref<16x128xf32, #tpu.memory_space<vmem>>) attributes {dimension_semantics = [#tpu.dimension_semantics<parallel>], iteration_bounds = array<i64: 1>, scalar_prefetch = 0 : i64, scratch_operands = 0 : i64, tpu.core_type = #tpu.core_type<tc>, window_params = [{transform_indices = @transform_0, window_bounds = array<i64: 16, 128>}, {pipeline_mode = #tpu.pipeline_mode<synchronous>, transform_indices = @transform_1, window_bounds = array<i64: 1, 128>}, {pipeline_mode = #tpu.pipeline_mode<synchronous>, transform_indices = @transform_2, window_bounds = array<i64: 1, 128>}, {transform_indices = @transform_3, window_bounds = array<i64: 16, 128>}]} {
    %c0 = arith.constant 0 : index
    %c0_0 = arith.constant 0 : index
    %0 = vector.load %arg1[%c0, %c0_0] : memref<16x128xf32, #tpu.memory_space<vmem>>, vector<16x128xf32>
    %c0_1 = arith.constant 0 : index
    %c0_2 = arith.constant 0 : index
    %1 = vector.load %arg2[%c0_1, %c0_2] : memref<1x128xf32, #tpu.memory_space<vmem>>, vector<1x128xf32>
    %c0_3 = arith.constant 0 : index
    %c0_4 = arith.constant 0 : index
    %2 = vector.load %arg3[%c0_3, %c0_4] : memref<1x128xf32, #tpu.memory_space<vmem>>, vector<1x128xf32>
    %3 = tpu.iota {dimensions = array<i32: 1>} : vector<1x128xi32>
    %c32_i32 = arith.constant 32 : i32
    %4 = vector.broadcast %c32_i32 : i32 to vector<1x128xi32>
    %5 = arith.cmpi slt, %3, %4 : vector<1x128xi32>
    %cst = arith.constant 0.000000e+00 : f32
    %6 = vector.shape_cast %5 : vector<1x128xi1> to vector<1x128xi1>
    %7 = vector.broadcast %6 : vector<1x128xi1> to vector<16x128xi1>
    %8 = vector.broadcast %cst : f32 to vector<16x128xf32>
    %9 = arith.select %7, %0, %8 : vector<16x128xi1>, vector<16x128xf32>
    %cst_5 = arith.constant dense<0.000000e+00> : vector<16xf32>
    %10 = vector.multi_reduction <add>, %9, %cst_5 [1] : vector<16x128xf32> to vector<16xf32>
    %11 = vector.shape_cast %10 : vector<16xf32> to vector<16x1xf32>
    %cst_6 = arith.constant 3.125000e-02 : f32
    %12 = vector.broadcast %cst_6 : f32 to vector<16x1xf32>
    %13 = arith.mulf %11, %12 : vector<16x1xf32>
    %14 = vector.broadcast %13 : vector<16x1xf32> to vector<16x128xf32>
    %15 = arith.subf %9, %14 : vector<16x128xf32>
    %cst_7 = arith.constant 0.000000e+00 : f32
    %16 = vector.shape_cast %5 : vector<1x128xi1> to vector<1x128xi1>
    %17 = vector.broadcast %16 : vector<1x128xi1> to vector<16x128xi1>
    %18 = vector.broadcast %cst_7 : f32 to vector<16x128xf32>
    %19 = arith.select %17, %15, %18 : vector<16x128xi1>, vector<16x128xf32>
    %20 = arith.mulf %19, %19 : vector<16x128xf32>
    %cst_8 = arith.constant dense<0.000000e+00> : vector<16xf32>
    %21 = vector.multi_reduction <add>, %20, %cst_8 [1] : vector<16x128xf32> to vector<16xf32>
    %22 = vector.shape_cast %21 : vector<16xf32> to vector<16x1xf32>
    %cst_9 = arith.constant 3.125000e-02 : f32
    %23 = vector.broadcast %cst_9 : f32 to vector<16x1xf32>
    %24 = arith.mulf %22, %23 : vector<16x1xf32>
    %cst_10 = arith.constant 9.99999974E-6 : f32
    %25 = vector.broadcast %cst_10 : f32 to vector<16x1xf32>
    %26 = arith.addf %24, %25 : vector<16x1xf32>
    %27 = math.rsqrt %26 : vector<16x1xf32>
    %28 = vector.broadcast %27 : vector<16x1xf32> to vector<16x128xf32>
    %29 = arith.mulf %19, %28 : vector<16x128xf32>
    %30 = vector.broadcast %1 : vector<1x128xf32> to vector<16x128xf32>
    %31 = arith.mulf %30, %29 : vector<16x128xf32>
    %32 = vector.broadcast %2 : vector<1x128xf32> to vector<16x128xf32>
    %33 = arith.addf %31, %32 : vector<16x128xf32>
    %c0_11 = arith.constant 0 : index
    %c0_12 = arith.constant 0 : index
    %34 = vector.load %arg4[%c0_11, %c0_12] : memref<16x128xf32, #tpu.memory_space<vmem>>, vector<16x128xf32>
    tpu.vector_store %arg4[%c0_11, %c0_12], %33 {strides = array<i32>} : memref<16x128xf32, #tpu.memory_space<vmem>>, vector<16x128xf32>,
    return
  }
  func.func @transform_0(%arg0: i32) -> (i32, i32) {
    %c0_i32 = arith.constant 0 : i32
    %c0_i32_0 = arith.constant 0 : i32
    return %arg0, %c0_i32 : i32, i32
  }
  func.func @transform_1(%arg0: i32) -> (i32, i32) {
    %c0_i32 = arith.constant 0 : i32
    %c0_i32_0 = arith.constant 0 : i32
    %c0_i32_1 = arith.constant 0 : i32
    return %c0_i32, %c0_i32_0 : i32, i32
  }
  func.func @transform_2(%arg0: i32) -> (i32, i32) {
    %c0_i32 = arith.constant 0 : i32
    %c0_i32_0 = arith.constant 0 : i32
    %c0_i32_1 = arith.constant 0 : i32
    return %c0_i32, %c0_i32_0 : i32, i32
  }
  func.func @transform_3(%arg0: i32) -> (i32, i32) {
    %c0_i32 = arith.constant 0 : i32
    %c0_i32_0 = arith.constant 0 : i32
    return %arg0, %c0_i32 : i32, i32
  }
}

</mosaic_0001>

<llo_original>
// kernel: tpu_custom_call.1
$region0: #{tpu_custom_call.1}
  #allocation0 [shape = 'u32[]', space=smem, size = 0x4, offset = 0x4, fixed_abs, tag = 'smem constant byte address 0x4 - core index']
  #allocation1 [shape = 'u32[144,128]{1,0:T(1,128)}', space=vmem, size = 0x12000, scoped, tag = 'internal scratch']
  %s0 = inlined_call_operand.hbm [shape: f32[16,128], index: 0, kind: input, shape index: {}]
  %s1 = inlined_call_operand.vmem [shape: f32[1,128], index: 1, kind: input, shape index: {}]
  %s2 = inlined_call_operand.vmem [shape: f32[1,128], index: 2, kind: input, shape index: {}]
  %s3 = inlined_call_operand.hbm [shape: f32[16,128], index: 3, kind: output, shape index: {}]
  %s4 = sld [smem:[#allocation0]]
  $region26: #{tpu_custom_call.1} parent=0
    _
  %s6 = ssub.s32 1, %s4
  %s7 = scalar_select 0, %s6, %s4
  $region1: #{tpu_custom_call.1} parent=0
    #allocation2 [shape = 'u8[8192]{0}', space=vmem, size = 0x2000, scoped, tag = 'input window, operand 0, single buffered']
    #allocation3 [shape = 's32[1]{0}', space=sflag, size = 0x4, scoped, tag = 'scoped memory for tpu_custom_call.1']
    #allocation4 [shape = 's32[1]{0}', space=sflag, size = 0x4, scoped, tag = 'scoped memory for tpu_custom_call.1']
    #allocation5 [shape = 'u8[8192]{0}', space=vmem, size = 0x2000, scoped, tag = 'output window, operand 0, single buffered']
    %8 = vsyncpa [#allocation3], 0
    %9 = vsyncpa [#allocation4], 0
    // Predicated region
    $region2: #{tpu_custom_call.1} parent=1 // pred_check
      _
    $region3: #{tpu_custom_call.1} parent=1 // pred_check_branch
      %11 = sbr.rel (0) target = $region5
    $region4: #{tpu_custom_call.1} parent=1 // pred_region
      %s13 = ssub.s32 256, 256
      %14 = vsyncadd [#allocation3], %s13
      %s15 = sshll.u32 [#allocation2], 4
      %s16 = int_to_ptr.vmem [resolvable:$true] %s15
      %21 = dma.hbm_to_vmem [thread:$0]  %s0, 256, %s16, [#allocation3], 128, 128, 8
    $region5: #{tpu_custom_call.1} parent=1 // pred_fallthru
      _
    // Predicated region
    $region6: #{tpu_custom_call.1} parent=1 // pred_check
      _
    $region7: #{tpu_custom_call.1} parent=1 // pred_check_branch
      %23 = sbr.rel (0) target = $region9
    $region8: #{tpu_custom_call.1} parent=1 // pred_region
      _
    $region9: #{tpu_custom_call.1} parent=1 // pred_fallthru
      _
    // Predicated region
    $region10: #{tpu_custom_call.1} parent=1 // pred_check
      _
    $region11: #{tpu_custom_call.1} parent=1 // pred_check_branch
      %25 = sbr.rel (0) target = $region13
    $region12: #{tpu_custom_call.1} parent=1 // pred_region
      _
    $region13: #{tpu_custom_call.1} parent=1 // pred_fallthru
      _
    // Predicated region
    $region14: #{tpu_custom_call.1} parent=1 // pred_check
      _
    $region15: #{tpu_custom_call.1} parent=1 // pred_check_branch
      %27 = sbr.rel (0) target = $region17
    $region16: #{tpu_custom_call.1} parent=1 // pred_region
      %28 = dma.done [#allocation3], 256
    $region17: #{tpu_custom_call.1} parent=1 // pred_fallthru
      _
    %v29 = vld [vmem:[#allocation2] sm:$0xff]
    %v30 = vld [vmem:[#allocation2 + $0x8] sm:$0xff]
    %v31 = vld [vmem:[%s1] sm:$0x1]
    %v32 = vld [vmem:[%s2] sm:$0x1]
    %v33 = vlaneseq
    %v34 = vand.u32 %v33, 127
    %vm35 = vcmp.lt.s32.totalorder %v34, 32
    %v36 = vsel %vm35, 1, 0
    %vm37 = vcmp.eq.s32.totalorder %v36, 1
    %v38 = vsel %vm37, %v29, 0.0
    %v39 = vsel %vm37, %v30, 0.0
    %40 = vadd.xlane.f32.xlu0 %v38
    %v41 = vpop.xlane.xlu0 %40
    %42 = vadd.xlane.f32.xlu0 %v39
    %v43 = vpop.xlane.xlu0 %42
    %v44 = vmul.f32 %v41, 0.03125
    %v45 = vmul.f32 %v43, 0.03125
    %v46 = vsub.f32 %v38, %v44
    %v47 = vsub.f32 %v39, %v45
    %v48 = vsel %vm37, %v46, 0.0
    %v49 = vsel %vm37, %v47, 0.0
    %v50 = vmul.f32 %v48, %v48
    %v51 = vmul.f32 %v49, %v49
    %52 = vadd.xlane.f32.xlu0 %v50
    %v53 = vpop.xlane.xlu0 %52
    %54 = vadd.xlane.f32.xlu0 %v51
    %v55 = vpop.xlane.xlu0 %54
    %v56 = vmul.f32 %v53, 0.03125
    %v57 = vmul.f32 %v55, 0.03125
    %v58 = vadd.f32 %v56, 1e-05
    %v59 = vadd.f32 %v57, 1e-05
    %v60 = vrsqrt.pop %v58
    %v61 = vrsqrt.pop %v59
    %v62 = vmul.f32 %v48, %v60
    %v63 = vmul.f32 %v49, %v61
    %v65 = vlaneseq
    %v66 = vshrl.u32 %v65, 7
    %v67 = vsub.s32 0, %v66
    %v68 = vrot.slane %v31, %v67
    %v70 = vmul.f32 %v68, %v62
    %v71 = vmul.f32 %v68, %v63
    %v73 = vlaneseq
    %v74 = vshrl.u32 %v73, 7
    %v75 = vsub.s32 0, %v74
    %v76 = vrot.slane %v32, %v75
    %v78 = vadd.f32 %v70, %v76
    %v79 = vadd.f32 %v71, %v76
    %80 = vst [vmem:[#allocation5] sm:$0xff] %v78
    %81 = vst [vmem:[#allocation5 + $0x8] sm:$0xff] %v79
    // Predicated region
    $region18: #{tpu_custom_call.1} parent=1 // pred_check
      _
    $region19: #{tpu_custom_call.1} parent=1 // pred_check_branch
      %83 = sbr.rel (0) target = $region21
    $region20: #{tpu_custom_call.1} parent=1 // pred_region
      %s85 = ssub.s32 256, 256
      %86 = vsyncadd [#allocation4], %s85
      %s87 = sshll.u32 [#allocation5], 4
      %s88 = int_to_ptr.vmem [resolvable:$true] %s87
      %93 = dma.vmem_to_hbm [thread:$0]  %s88, 256, %s3, [#allocation4], 128, 128, 8
    $region21: #{tpu_custom_call.1} parent=1 // pred_fallthru
      _
    // Predicated region
    $region22: #{tpu_custom_call.1} parent=1 // pred_check
      _
    $region23: #{tpu_custom_call.1} parent=1 // pred_check_branch
      %95 = sbr.rel (0) target = $region25
    $region24: #{tpu_custom_call.1} parent=1 // pred_region
      %96 = dma.done [#allocation4], 256
    $region25: #{tpu_custom_call.1} parent=1 // pred_fallthru
      _
    %97 = vsyncpa [#allocation3], 1
    %98 = vsyncpa [#allocation4], 1

</llo_original>
